<compile_context>
chip_gen: v7x
topology: tpu7x:2x2x1
jax: 0.10.0
libtpu: 0.0.40
codegen_flags: <defaults>
</compile_context>

<pallas_src>
import jax
import jax.numpy as jnp
from jax import lax
from jax.experimental import pallas as pl
from jax.experimental.pallas import tpu as pltpu

# ----------------------------- configuration --------------------------------
OBS_DIM = 16                 # observation_space.shape[0]
ACT_DIM = 4                  # action_space.shape[0]
HIDDEN = (256, 256)          # default hidden_layers=[256, 256]
LOG_STD_MIN, LOG_STD_MAX = -5.0, 2.0   # log_std_bounds
ACT_LOW, ACT_HIGH = -1.0, 1.0          # action_range

LANE = 128                   # TPU lane width; merged head padded to one vreg row
MAX_BM = 1024                # cap on the batch tile

# log_std = A * tanh(x) + C   (single-FMA form of the bounding map)
_A = 0.5 * (LOG_STD_MAX - LOG_STD_MIN)
_C = LOG_STD_MIN + _A


# ------------------------------- kernel -------------------------------------
def actor_kernel(obs_ref, w1_ref, b1_ref, w2_ref, b2_ref, w3_ref, b3_ref,
                 out_ref):
    bf = jnp.bfloat16

    # hidden layer 1: bf16 MXU matmul, f32 accumulate, f32 bias + ReLU
    h = jnp.dot(obs_ref[...].astype(bf), w1_ref[...],
                preferred_element_type=jnp.float32)
    h = jnp.maximum(h + b1_ref[...], 0.0)

    # hidden layer 2
    h = jnp.dot(h.astype(bf), w2_ref[...], preferred_element_type=jnp.float32)
    h = jnp.maximum(h + b2_ref[...], 0.0)

    # merged output head (single matmul):
    #   lanes 0..ACT_DIM-1        = mu
    #   lanes ACT_DIM..2*ACT_DIM-1 = raw log_std
    #   lanes >= 2*ACT_DIM         = 0 (zero-padded weights/bias)
    y = jnp.dot(h.astype(bf), w3_ref[...],
                preferred_element_type=jnp.float32) + b3_ref[...]

    # tanh once: lanes 0..3 give action = tanh(mu), lanes 4..7 give tanh(log_std)
    t = jnp.tanh(y)
    # std = exp(A*tanh(log_std) + C)  -> valid in lanes ACT_DIM..2*ACT_DIM-1
    std = jnp.exp(_A * t + _C)
    # move action (lanes 0..3 of t) into lanes 2*ACT_DIM..3*ACT_DIM-1 (XLU roll)
    act = pltpu.roll(t, shift=2 * ACT_DIM, axis=1)
    if ACT_LOW > -1.0 or ACT_HIGH < 1.0:     # only emit clip if it can bind
        act = jnp.clip(act, ACT_LOW, ACT_HIGH)

    # pack [ mu | std | action | ... ] into one 128-lane block
    lane = lax.broadcasted_iota(jnp.int32, y.shape, dimension=1)
    packed = jnp.where(lane < ACT_DIM, y,
                       jnp.where(lane < 2 * ACT_DIM, std, act))
    out_ref[...] = packed.astype(out_ref.dtype)


# ---------------------------- one-time param prep ----------------------------
def prepare_params(params):
    """Hoisted preprocessing: bf16 casts, merged/padded output head, bias rows.
    Call once; reuse the result for every forward call."""
    w1, b1, w2, b2, w3, b3 = params
    bf = jnp.bfloat16
    w3m = jnp.pad(w3, ((0, 0), (0, LANE - 2 * ACT_DIM)))            # (H, 128)
    b3m = jnp.pad(b3, (0, LANE - 2 * ACT_DIM)).reshape(1, LANE)     # (1, 128)
    return (w1.astype(bf), b1.reshape(1, -1).astype(jnp.float32),
            w2.astype(bf), b2.reshape(1, -1).astype(jnp.float32),
            w3m.astype(bf), b3m.astype(jnp.float32))


# ------------------------------- wrapper -------------------------------------
def _choose_bm(batch):
    # Big tiles to amortize per-grid-step overhead, but target >= 2 tiles so
    # v7x's two TensorCores both get work under dimension_semantics=parallel.
    half = (batch + 1) // 2
    bm = ((half + LANE - 1) // LANE) * LANE
    return max(LANE, min(bm, MAX_BM))


def diagonal_gaussian_actor_forward(obs, prepped):
    """obs: (B, OBS_DIM) f32; prepped: output of prepare_params.
    Returns (mu, std, action), each (B, ACT_DIM) f32."""
    B = obs.shape[0]
    bm = _choose_bm(B)
    b_pad = ((B + bm - 1) // bm) * bm
    if b_pad != B:
        obs = jnp.pad(obs, ((0, b_pad - B), (0, 0)))

    grid = (b_pad // bm,)

    def batch_tiled(shape):
        return pl.BlockSpec(shape, lambda i: (i, 0))

    def resident(shape):
        # constant block index -> weights stay VMEM-resident across batch tiles
        return pl.BlockSpec(shape, lambda i: (0, 0))

    in_specs = [batch_tiled((bm, OBS_DIM))] + [resident(p.shape) for p in prepped]

    out = pl.pallas_call(
        actor_kernel,
        grid=grid,
        out_shape=jax.ShapeDtypeStruct((b_pad, LANE), jnp.bfloat16),
        in_specs=in_specs,
        out_specs=batch_tiled((bm, LANE)),
        compiler_params=pltpu.CompilerParams(
            dimension_semantics=("parallel",)),
    )(obs, *prepped)

    mu = out[:B, 0 * ACT_DIM:1 * ACT_DIM].astype(jnp.float32)
    std = out[:B, 1 * ACT_DIM:2 * ACT_DIM].astype(jnp.float32)
    action = out[:B, 2 * ACT_DIM:3 * ACT_DIM].astype(jnp.float32)
    return mu, std, action


# ---------------------------- parameter setup --------------------------------
def init_params(key):
    """Deterministic synthetic init.  Weights stored as (in, out) so the kernel
    computes x @ W (== PyTorch x @ weight.T with weight (out, in))."""
    dims = (OBS_DIM,) + HIDDEN + (2 * ACT_DIM,)
    params = []
    keys = jax.random.split(key, 2 * (len(dims) - 1))
    for i in range(len(dims) - 1):
        fan_in, fan_out = dims[i], dims[i + 1]
        bound = 1.0 / jnp.sqrt(fan_in)
        w = jax.random.uniform(keys[2 * i], (fan_in, fan_out),
                               jnp.float32, -bound, bound)
        b = jax.random.uniform(keys[2 * i + 1], (fan_out,),
                               jnp.float32, -bound, bound)
        params += [w, b]
    return tuple(params)


# --------------------------------- main ---------------------------------------
if __name__ == "__main__":
    B = 256   # two 128-row batch tiles -> exercises the (parallel) grid
    key = jax.random.PRNGKey(0)
    k_obs, k_par = jax.random.split(key)
    obs = jax.random.normal(k_obs, (B, OBS_DIM), jnp.float32)
    params = init_params(k_par)

    prepped = jax.block_until_ready(prepare_params(params))   # one-time prep
    fwd = jax.jit(diagonal_gaussian_actor_forward)
    mu, std, action = jax.block_until_ready(fwd(obs, prepped))

    # pure-JAX reference mirroring the kernel's bf16-in / f32-accumulate matmuls
    w1, b1, w2, b2, w3, b3 = params
    bf = jnp.bfloat16
    h = jnp.maximum(jnp.dot(obs.astype(bf), w1.astype(bf),
                            preferred_element_type=jnp.float32) + b1, 0.0)
    h = jnp.maximum(jnp.dot(h.astype(bf), w2.astype(bf),
                            preferred_element_type=jnp.float32) + b2, 0.0)
    out = jnp.dot(h.astype(bf), w3.astype(bf),
                  preferred_element_type=jnp.float32) + b3
    mu_ref, ls_ref = out[:, :ACT_DIM], out[:, ACT_DIM:]
    ls_ref = jnp.tanh(ls_ref)
    ls_ref = LOG_STD_MIN + 0.5 * (LOG_STD_MAX - LOG_STD_MIN) * (ls_ref + 1.0)
    std_ref = jnp.exp(ls_ref)
    act_ref = jnp.clip(jnp.tanh(mu_ref), ACT_LOW, ACT_HIGH)

    # kernel output is bf16-rounded -> allow ~1% relative slack
    assert jnp.allclose(mu, mu_ref, atol=1e-2, rtol=1e-2)
    assert jnp.allclose(std, std_ref, atol=1e-2, rtol=1e-2)
    assert jnp.allclose(action, act_ref, atol=1e-2, rtol=1e-2)

    print("KERNEL_OK")
</pallas_src>

<mosaic_0001>
module attributes {stable_mosaic.version = 11 : i64} {
  func.func @actor_kernel(%arg0: i32, %arg1: memref<128x16xf32, #tpu.memory_space<vmem>>, %arg2: memref<16x256xbf16, #tpu.memory_space<vmem>>, %arg3: memref<1x256xf32, #tpu.memory_space<vmem>>, %arg4: memref<256x256xbf16, #tpu.memory_space<vmem>>, %arg5: memref<1x256xf32, #tpu.memory_space<vmem>>, %arg6: memref<256x128xbf16, #tpu.memory_space<vmem>>, %arg7: memref<1x128xf32, #tpu.memory_space<vmem>>, %arg8: memref<128x128xbf16, #tpu.memory_space<vmem>>) attributes {dimension_semantics = [#tpu.dimension_semantics<parallel>], iteration_bounds = array<i64: 2>, scalar_prefetch = 0 : i64, scratch_operands = 0 : i64, tpu.core_type = #tpu.core_type<tc>, window_params = [{transform_indices = @transform_0, window_bounds = array<i64: 128, 16>}, {pipeline_mode = #tpu.pipeline_mode<synchronous>, transform_indices = @transform_1, window_bounds = array<i64: 16, 256>}, {pipeline_mode = #tpu.pipeline_mode<synchronous>, transform_indices = @transform_2, window_bounds = array<i64: 1, 256>}, {pipeline_mode = #tpu.pipeline_mode<synchronous>, transform_indices = @transform_3, window_bounds = array<i64: 256, 256>}, {pipeline_mode = #tpu.pipeline_mode<synchronous>, transform_indices = @transform_4, window_bounds = array<i64: 1, 256>}, {pipeline_mode = #tpu.pipeline_mode<synchronous>, transform_indices = @transform_5, window_bounds = array<i64: 256, 128>}, {pipeline_mode = #tpu.pipeline_mode<synchronous>, transform_indices = @transform_6, window_bounds = array<i64: 1, 128>}, {transform_indices = @transform_7, window_bounds = array<i64: 128, 128>}]} {
    %c0 = arith.constant 0 : index
    %c0_0 = arith.constant 0 : index
    %0 = vector.load %arg1[%c0, %c0_0] : memref<128x16xf32, #tpu.memory_space<vmem>>, vector<128x16xf32>
    %1 = arith.truncf %0 : vector<128x16xf32> to vector<128x16xbf16>
    %c0_1 = arith.constant 0 : index
    %c0_2 = arith.constant 0 : index
    %2 = vector.load %arg2[%c0_1, %c0_2] : memref<16x256xbf16, #tpu.memory_space<vmem>>, vector<16x256xbf16>
    %cst = arith.constant dense<0.000000e+00> : vector<128x256xf32>
    %3 = tpu.matmul %1, %2, %cst {dimension_numbers = #tpu.dot_dimension_numbers<[1], [0], [0], [1], [0, 0, 1, 1], [], []>} : vector<128x16xbf16>, vector<16x256xbf16>, vector<128x256xf32> -> vector<128x256xf32>
    %c0_3 = arith.constant 0 : index
    %c0_4 = arith.constant 0 : index
    %4 = vector.load %arg3[%c0_3, %c0_4] : memref<1x256xf32, #tpu.memory_space<vmem>>, vector<1x256xf32>
    %5 = vector.broadcast %4 : vector<1x256xf32> to vector<128x256xf32>
    %6 = arith.addf %3, %5 : vector<128x256xf32>
    %cst_5 = arith.constant 0.000000e+00 : f32
    %7 = vector.broadcast %cst_5 : f32 to vector<128x256xf32>
    %8 = arith.maximumf %6, %7 : vector<128x256xf32>
    %9 = arith.truncf %8 : vector<128x256xf32> to vector<128x256xbf16>
    %c0_6 = arith.constant 0 : index
    %c0_7 = arith.constant 0 : index
    %10 = vector.load %arg4[%c0_6, %c0_7] : memref<256x256xbf16, #tpu.memory_space<vmem>>, vector<256x256xbf16>
    %cst_8 = arith.constant dense<0.000000e+00> : vector<128x256xf32>
    %11 = tpu.matmul %9, %10, %cst_8 {dimension_numbers = #tpu.dot_dimension_numbers<[1], [0], [0], [1], [0, 0, 1, 1], [], []>} : vector<128x256xbf16>, vector<256x256xbf16>, vector<128x256xf32> -> vector<128x256xf32>
    %c0_9 = arith.constant 0 : index
    %c0_10 = arith.constant 0 : index
    %12 = vector.load %arg5[%c0_9, %c0_10] : memref<1x256xf32, #tpu.memory_space<vmem>>, vector<1x256xf32>
    %13 = vector.broadcast %12 : vector<1x256xf32> to vector<128x256xf32>
    %14 = arith.addf %11, %13 : vector<128x256xf32>
    %cst_11 = arith.constant 0.000000e+00 : f32
    %15 = vector.broadcast %cst_11 : f32 to vector<128x256xf32>
    %16 = arith.maximumf %14, %15 : vector<128x256xf32>
    %17 = arith.truncf %16 : vector<128x256xf32> to vector<128x256xbf16>
    %c0_12 = arith.constant 0 : index
    %c0_13 = arith.constant 0 : index
    %18 = vector.load %arg6[%c0_12, %c0_13] : memref<256x128xbf16, #tpu.memory_space<vmem>>, vector<256x128xbf16>
    %cst_14 = arith.constant dense<0.000000e+00> : vector<128x128xf32>
    %19 = tpu.matmul %17, %18, %cst_14 {dimension_numbers = #tpu.dot_dimension_numbers<[1], [0], [0], [1], [0, 0, 1, 1], [], []>} : vector<128x256xbf16>, vector<256x128xbf16>, vector<128x128xf32> -> vector<128x128xf32>
    %c0_15 = arith.constant 0 : index
    %c0_16 = arith.constant 0 : index
    %20 = vector.load %arg7[%c0_15, %c0_16] : memref<1x128xf32, #tpu.memory_space<vmem>>, vector<1x128xf32>
    %21 = vector.broadcast %20 : vector<1x128xf32> to vector<128x128xf32>
    %22 = arith.addf %19, %21 : vector<128x128xf32>
    %23 = math.tanh %22 : vector<128x128xf32>
    %cst_17 = arith.constant 3.500000e+00 : f32
    %24 = vector.broadcast %cst_17 : f32 to vector<128x128xf32>
    %25 = arith.mulf %24, %23 : vector<128x128xf32>
    %cst_18 = arith.constant -1.500000e+00 : f32
    %26 = vector.broadcast %cst_18 : f32 to vector<128x128xf32>
    %27 = arith.addf %25, %26 : vector<128x128xf32>
    %28 = math.exp %27 : vector<128x128xf32>
    %c8_i32 = arith.constant 8 : i32
    %29 = tpu.dynamic_rotate %23 by %c8_i32 dim 1 : vector<128x128xf32>, i32 -> vector<128x128xf32>
    %30 = tpu.iota {dimensions = array<i32: 1>} : vector<128x128xi32>
    %c4_i32 = arith.constant 4 : i32
    %31 = vector.broadcast %c4_i32 : i32 to vector<128x128xi32>
    %32 = arith.cmpi slt, %30, %31 : vector<128x128xi32>
    %c8_i32_19 = arith.constant 8 : i32
    %33 = vector.broadcast %c8_i32_19 : i32 to vector<128x128xi32>
    %34 = arith.cmpi slt, %30, %33 : vector<128x128xi32>
    %35 = arith.select %34, %28, %29 : vector<128x128xi1>, vector<128x128xf32>
    %36 = arith.select %32, %22, %35 : vector<128x128xi1>, vector<128x128xf32>
    %37 = arith.truncf %36 : vector<128x128xf32> to vector<128x128xbf16>
    %c0_20 = arith.constant 0 : index
    %c0_21 = arith.constant 0 : index
    %38 = vector.load %arg8[%c0_20, %c0_21] : memref<128x128xbf16, #tpu.memory_space<vmem>>, vector<128x128xbf16>
    tpu.vector_store %arg8[%c0_20, %c0_21], %37 {strides = array<i32>} : memref<128x128xbf16, #tpu.memory_space<vmem>>, vector<128x128xbf16>,
    return
  }
  func.func @transform_0(%arg0: i32) -> (i32, i32) {
    %c0_i32 = arith.constant 0 : i32
    %c0_i32_0 = arith.constant 0 : i32
    return %arg0, %c0_i32 : i32, i32
  }
  func.func @transform_1(%arg0: i32) -> (i32, i32) {
    %c0_i32 = arith.constant 0 : i32
    %c0_i32_0 = arith.constant 0 : i32
    %c0_i32_1 = arith.constant 0 : i32
    return %c0_i32, %c0_i32_0 : i32, i32
  }
  func.func @transform_2(%arg0: i32) -> (i32, i32) {
    %c0_i32 = arith.constant 0 : i32
    %c0_i32_0 = arith.constant 0 : i32
    %c0_i32_1 = arith.constant 0 : i32
    return %c0_i32, %c0_i32_0 : i32, i32
  }
  func.func @transform_3(%arg0: i32) -> (i32, i32) {
    %c0_i32 = arith.constant 0 : i32
    %c0_i32_0 = arith.constant 0 : i32
    %c0_i32_1 = arith.constant 0 : i32
    return %c0_i32, %c0_i32_0 : i32, i32
  }
  func.func @transform_4(%arg0: i32) -> (i32, i32) {
    %c0_i32 = arith.constant 0 : i32
    %c0_i32_0 = arith.constant 0 : i32
    %c0_i32_1 = arith.constant 0 : i32
    return %c0_i32, %c0_i32_0 : i32, i32
  }
  func.func @transform_5(%arg0: i32) -> (i32, i32) {
    %c0_i32 = arith.constant 0 : i32
    %c0_i32_0 = arith.constant 0 : i32
    %c0_i32_1 = arith.constant 0 : i32
    return %c0_i32, %c0_i32_0 : i32, i32
  }
  func.func @transform_6(%arg0: i32) -> (i32, i32) {
    %c0_i32 = arith.constant 0 : i32
    %c0_i32_0 = arith.constant 0 : i32
    %c0_i32_1 = arith.constant 0 : i32
    return %c0_i32, %c0_i32_0 : i32, i32
  }
  func.func @transform_7(%arg0: i32) -> (i32, i32) {
    %c0_i32 = arith.constant 0 : i32
    %c0_i32_0 = arith.constant 0 : i32
    return %arg0, %c0_i32 : i32, i32
  }
}

</mosaic_0001>

<llo_original>
// kernel: diagonal_gaussian_actor_forward.1
$region0: #{diagonal_gaussian_actor_forward.1}
  #allocation0 [shape = 'u32[]', space=smem, size = 0x4, offset = 0x4, fixed_abs, tag = 'smem constant byte address 0x4 - core index']
  #allocation1 [shape = 'u32[144,128]{1,0:T(1,128)}', space=vmem, size = 0x12000, scoped, tag = 'internal scratch']
  %s0 = inlined_call_operand.vmem [shape: f32[256,16], index: 0, kind: input, shape index: {}]
  %s1 = inlined_call_operand.vmem [shape: bf16[16,256], index: 1, kind: input, shape index: {}]
  %s2 = inlined_call_operand.vmem [shape: f32[1,256], index: 2, kind: input, shape index: {}]
  %s3 = inlined_call_operand.vmem [shape: bf16[256,256], index: 3, kind: input, shape index: {}]
  %s4 = inlined_call_operand.vmem [shape: f32[1,256], index: 4, kind: input, shape index: {}]
  %s5 = inlined_call_operand.hbm [shape: bf16[256,128], index: 5, kind: input, shape index: {}]
  %s6 = inlined_call_operand.vmem [shape: f32[1,128], index: 6, kind: input, shape index: {}]
  %s7 = inlined_call_operand.vmem [shape: bf16[256,128], index: 7, kind: output, shape index: {}]
  %s8 = sld [smem:[#allocation0]]
  $region65: #{diagonal_gaussian_actor_forward.1} parent=0
    _
  %s10 = ssub.s32 1, %s8
  %s11 = scalar_select 0, %s10, %s8
  $region1: #{diagonal_gaussian_actor_forward.1} parent=0
    #allocation2 [shape = 'u8[65536]{0}', space=vmem, size = 0x10000, scoped, tag = 'input window, operand 5, single buffered']
    #allocation3 [shape = 's32[2]{0}', space=sflag, size = 0x8, scoped, tag = 'scoped memory for diagonal_gaussian_actor_forward.1']
    %12 = vsyncpa [#allocation3], 0
    loop: start=0, step=1, limit=4
    $region2: #{diagonal_gaussian_actor_forward.1} parent=1 // loop_pre_header
      _
    $region3: #{diagonal_gaussian_actor_forward.1} parent=1 // loop_header
      %s14 = sphi 0, %s18
      %p15 = scmp.ge.s32.totalorder %s14, 4
      %s24 = sphi 0, %s26
      %s27 = sphi 0, %s24
      %s28 = sphi 0, %s27
      %s44 = sphi 0, %s28
      %s48 = sphi 0, %s48
      %s50 = sphi 0, %s48
      %s51 = sphi 0, %s50
      %s65 = sphi 0, %s51
      %s69 = sphi 0, %s69
      %s71 = sphi 0, %s69
      %s72 = sphi 0, %s71
      %s86 = sphi 0, %s72
      %s90 = sphi 0, %s90
      %s92 = sphi 0, %s90
      %s93 = sphi 0, %s92
      %s107 = sphi 0, %s93
      %s111 = sphi 0, %s111
      %s113 = sphi 0, %s111
      %s114 = sphi 0, %s113
      %s128 = sphi 0, %s114
      %s132 = sphi 0, %s132
      %s134 = sphi 0, %s132
      %s135 = sphi 0, %s134
      %s149 = sphi 0, %s135
      %s153 = sphi 0, %s153
      %s155 = sphi 0, %s153
      %s156 = sphi 0, %s155
      %s170 = sphi 0, %s156
      %s176 = sphi 0, %s178
      %s179 = sphi 0, %s176
      %s180 = sphi 0, %s179
      %s196 = sphi 0, %s180
    $region4: #{diagonal_gaussian_actor_forward.1} parent=1 // loop_header_branch
      %17 = sbr.rel (%p15) target = $region8
    $region5: #{diagonal_gaussian_actor_forward.1} parent=1 // loop_body
      %s19 = ssub.s32 %s14, 1
      %s20 = ssub.s32 %s14, 2
      %s21 = sadd.s32 %s14, 1
      %s22 = ssub.s32 %s14, %s21
      %p23 = scmp.eq.s32.totalorder %s22, 0
      %s25 = sadd.s32 %s24, 1
      %s26 = scalar_select %p23, %s24, %s25
      %p29 = pneg %p23
      %p30 = scmp.eq.s32.totalorder %s14, 1
      %p31 = por %p29, %p30
      %p32 = scmp.ne.s32.totalorder %s24, %s27
      %p33 = scmp.eq.s32.totalorder %s14, 0
      %p34 = por %p32, %p33
      %p35 = scmp.ne.s32.totalorder %s24, %s27
      %p36 = scmp.eq.s32.totalorder %s19, 1
      %p37 = por %p35, %p36
      %p38 = scmp.ne.s32.totalorder %s27, %s28
      %p39 = scmp.eq.s32.totalorder %s19, 0
      %p40 = por %p38, %p39
      %p41 = scmp.ne.s32.totalorder %s27, %s28
      %p42 = scmp.eq.s32.totalorder %s20, 1
      %p43 = por %p41, %p42
      %p45 = scmp.ne.s32.totalorder %s28, %s44
      %p46 = scmp.eq.s32.totalorder %s20, 0
      %p47 = por %p45, %p46
      %s49 = sadd.s32 %s48, 1
      %p52 = scmp.eq.s32.totalorder %s14, 1
      %p53 = scmp.ne.s32.totalorder %s48, %s50
      %p54 = scmp.eq.s32.totalorder %s14, 0
      %p55 = por %p53, %p54
      %p56 = scmp.ne.s32.totalorder %s48, %s50
      %p57 = scmp.eq.s32.totalorder %s19, 1
      %p58 = por %p56, %p57
      %p59 = scmp.ne.s32.totalorder %s50, %s51
      %p60 = scmp.eq.s32.totalorder %s19, 0
      %p61 = por %p59, %p60
      %p62 = scmp.ne.s32.totalorder %s50, %s51
      %p63 = scmp.eq.s32.totalorder %s20, 1
      %p64 = por %p62, %p63
      %p66 = scmp.ne.s32.totalorder %s51, %s65
      %p67 = scmp.eq.s32.totalorder %s20, 0
      %p68 = por %p66, %p67
      %s70 = sadd.s32 %s69, 1
      %p73 = scmp.eq.s32.totalorder %s14, 1
      %p74 = scmp.ne.s32.totalorder %s69, %s71
      %p75 = scmp.eq.s32.totalorder %s14, 0
      %p76 = por %p74, %p75
      %p77 = scmp.ne.s32.totalorder %s69, %s71
      %p78 = scmp.eq.s32.totalorder %s19, 1
      %p79 = por %p77, %p78
      %p80 = scmp.ne.s32.totalorder %s71, %s72
      %p81 = scmp.eq.s32.totalorder %s19, 0
      %p82 = por %p80, %p81
      %p83 = scmp.ne.s32.totalorder %s71, %s72
      %p84 = scmp.eq.s32.totalorder %s20, 1
      %p85 = por %p83, %p84
      %p87 = scmp.ne.s32.totalorder %s72, %s86
      %p88 = scmp.eq.s32.totalorder %s20, 0
      %p89 = por %p87, %p88
      %s91 = sadd.s32 %s90, 1
      %p94 = scmp.eq.s32.totalorder %s14, 1
      %p95 = scmp.ne.s32.totalorder %s90, %s92
      %p96 = scmp.eq.s32.totalorder %s14, 0
      %p97 = por %p95, %p96
      %p98 = scmp.ne.s32.totalorder %s90, %s92
      %p99 = scmp.eq.s32.totalorder %s19, 1
      %p100 = por %p98, %p99
      %p101 = scmp.ne.s32.totalorder %s92, %s93
      %p102 = scmp.eq.s32.totalorder %s19, 0
      %p103 = por %p101, %p102
      %p104 = scmp.ne.s32.totalorder %s92, %s93
      %p105 = scmp.eq.s32.totalorder %s20, 1
      %p106 = por %p104, %p105
      %p108 = scmp.ne.s32.totalorder %s93, %s107
      %p109 = scmp.eq.s32.totalorder %s20, 0
      %p110 = por %p108, %p109
      %s112 = sadd.s32 %s111, 1
      %p115 = scmp.eq.s32.totalorder %s14, 1
      %p116 = scmp.ne.s32.totalorder %s111, %s113
      %p117 = scmp.eq.s32.totalorder %s14, 0
      %p118 = por %p116, %p117
      %p119 = scmp.ne.s32.totalorder %s111, %s113
      %p120 = scmp.eq.s32.totalorder %s19, 1
      %p121 = por %p119, %p120
      %p122 = scmp.ne.s32.totalorder %s113, %s114
      %p123 = scmp.eq.s32.totalorder %s19, 0
      %p124 = por %p122, %p123
      %p125 = scmp.ne.s32.totalorder %s113, %s114
      %p126 = scmp.eq.s32.totalorder %s20, 1
      %p127 = por %p125, %p126
      %p129 = scmp.ne.s32.totalorder %s114, %s128
      %p130 = scmp.eq.s32.totalorder %s20, 0
      %p131 = por %p129, %p130
      %s133 = sadd.s32 %s132, 1
      %p136 = scmp.eq.s32.totalorder %s14, 1
      %p137 = scmp.ne.s32.totalorder %s132, %s134
      %p138 = scmp.eq.s32.totalorder %s14, 0
      %p139 = por %p137, %p138
      %p140 = scmp.ne.s32.totalorder %s132, %s134
      %p141 = scmp.eq.s32.totalorder %s19, 1
      %p142 = por %p140, %p141
      %p143 = scmp.ne.s32.totalorder %s134, %s135
      %p144 = scmp.eq.s32.totalorder %s19, 0
      %p145 = por %p143, %p144
      %p146 = scmp.ne.s32.totalorder %s134, %s135
      %p147 = scmp.eq.s32.totalorder %s20, 1
      %p148 = por %p146, %p147
      %p150 = scmp.ne.s32.totalorder %s135, %s149
      %p151 = scmp.eq.s32.totalorder %s20, 0
      %p152 = por %p150, %p151
      %s154 = sadd.s32 %s153, 1
      %p157 = scmp.eq.s32.totalorder %s14, 1
      %p158 = scmp.ne.s32.totalorder %s153, %s155
      %p159 = scmp.eq.s32.totalorder %s14, 0
      %p160 = por %p158, %p159
      %p161 = scmp.ne.s32.totalorder %s153, %s155
      %p162 = scmp.eq.s32.totalorder %s19, 1
      %p163 = por %p161, %p162
      %p164 = scmp.ne.s32.totalorder %s155, %s156
      %p165 = scmp.eq.s32.totalorder %s19, 0
      %p166 = por %p164, %p165
      %p167 = scmp.ne.s32.totalorder %s155, %s156
      %p168 = scmp.eq.s32.totalorder %s20, 1
      %p169 = por %p167, %p168
      %p171 = scmp.ne.s32.totalorder %s156, %s170
      %p172 = scmp.eq.s32.totalorder %s20, 0
      %p173 = por %p171, %p172
      %s174 = ssub.s32 %s14, %s21
      %p175 = scmp.eq.s32.totalorder %s174, 0
      %s177 = sadd.s32 %s176, 1
      %s178 = scalar_select %p175, %s176, %s177
      %p181 = pneg %p175
      %p182 = scmp.eq.s32.totalorder %s14, 1
      %p183 = por %p181, %p182
      %p184 = scmp.ne.s32.totalorder %s176, %s179
      %p185 = scmp.eq.s32.totalorder %s14, 0
      %p186 = por %p184, %p185
      %p187 = scmp.ne.s32.totalorder %s176, %s179
      %p188 = scmp.eq.s32.totalorder %s19, 1
      %p189 = por %p187, %p188
      %p190 = scmp.ne.s32.totalorder %s179, %s180
      %p191 = scmp.eq.s32.totalorder %s19, 0
      %p192 = por %p190, %p191
      %p193 = scmp.ne.s32.totalorder %s179, %s180
      %p194 = scmp.eq.s32.totalorder %s20, 1
      %p195 = por %p193, %p194
      %p197 = scmp.ne.s32.totalorder %s180, %s196
      %p198 = scmp.eq.s32.totalorder %s20, 0
      %p199 = por %p197, %p198
      %p200 = scmp.le.s32.totalorder 1, %s14
      %p201 = scmp.lt.s32.totalorder %s14, 3
      %p202 = pnand %p200, %p201
      %p203 = pneg %p202
      // Predicated region
      $region9: #{diagonal_gaussian_actor_forward.1} parent=5 // pred_check
        _
      $region10: #{diagonal_gaussian_actor_forward.1} parent=5 // pred_check_branch
        %205 = sbr.rel (%p202) target = $region12
      $region11: #{diagonal_gaussian_actor_forward.1} parent=5 // pred_region
        %s206 = ssub.s32 %s14, 1
        // Predicated region
        $region13: #{diagonal_gaussian_actor_forward.1} parent=11 // pred_check
          %p207 = pneg %p61
        $region14: #{diagonal_gaussian_actor_forward.1} parent=11 // pred_check_branch
          %209 = sbr.rel (%p207) target = $region16
        $region15: #{diagonal_gaussian_actor_forward.1} parent=11 // pred_region
          _
        $region16: #{diagonal_gaussian_actor_forward.1} parent=11 // pred_fallthru
          _
        // Predicated region
        $region17: #{diagonal_gaussian_actor_forward.1} parent=11 // pred_check
          %p210 = pneg %p82
        $region18: #{diagonal_gaussian_actor_forward.1} parent=11 // pred_check_branch
          %212 = sbr.rel (%p210) target = $region20
        $region19: #{diagonal_gaussian_actor_forward.1} parent=11 // pred_region
          _
        $region20: #{diagonal_gaussian_actor_forward.1} parent=11 // pred_fallthru
          _
        // Predicated region
        $region21: #{diagonal_gaussian_actor_forward.1} parent=11 // pred_check
          %p213 = pneg %p103
        $region22: #{diagonal_gaussian_actor_forward.1} parent=11 // pred_check_branch
          %215 = sbr.rel (%p213) target = $region24
        $region23: #{diagonal_gaussian_actor_forward.1} parent=11 // pred_region
          _
        $region24: #{diagonal_gaussian_actor_forward.1} parent=11 // pred_fallthru
          _
        // Predicated region
        $region25: #{diagonal_gaussian_actor_forward.1} parent=11 // pred_check
          %p216 = pneg %p124
        $region26: #{diagonal_gaussian_actor_forward.1} parent=11 // pred_check_branch
          %218 = sbr.rel (%p216) target = $region28
        $region27: #{diagonal_gaussian_actor_forward.1} parent=11 // pred_region
          _
        $region28: #{diagonal_gaussian_actor_forward.1} parent=11 // pred_fallthru
          _
        // Predicated region
        $region29: #{diagonal_gaussian_actor_forward.1} parent=11 // pred_check
          %p219 = pneg %p145
        $region30: #{diagonal_gaussian_actor_forward.1} parent=11 // pred_check_branch
          %221 = sbr.rel (%p219) target = $region32
        $region31: #{diagonal_gaussian_actor_forward.1} parent=11 // pred_region
          %s223 = ssub.s32 2048, 2048
          %224 = vsyncadd [#allocation3], %s223
          %s225 = sshll.u32 [#allocation2], 4
          %s226 = int_to_ptr.vmem [resolvable:$true] %s225
          %231 = dma.hbm_to_vmem [thread:$0]  %s5, 2048, %s226, [#allocation3], 64, 64, 4
        $region32: #{diagonal_gaussian_actor_forward.1} parent=11 // pred_fallthru
          _
        // Predicated region
        $region33: #{diagonal_gaussian_actor_forward.1} parent=11 // pred_check
          %p232 = pneg %p166
        $region34: #{diagonal_gaussian_actor_forward.1} parent=11 // pred_check_branch
          %234 = sbr.rel (%p232) target = $region36
        $region35: #{diagonal_gaussian_actor_forward.1} parent=11 // pred_region
          _
        $region36: #{diagonal_gaussian_actor_forward.1} parent=11 // pred_fallthru
          _
      $region12: #{diagonal_gaussian_actor_forward.1} parent=5 // pred_fallthru
        _
      %p235 = scmp.lt.s32.totalorder %s14, 2
      // Predicated region
      $region37: #{diagonal_gaussian_actor_forward.1} parent=5 // pred_check
        %p236 = pneg %p235
      $region38: #{diagonal_gaussian_actor_forward.1} parent=5 // pred_check_branch
        %238 = sbr.rel (%p236) target = $region40
      $region39: #{diagonal_gaussian_actor_forward.1} parent=5 // pred_region
        // Predicated region
        $region41: #{diagonal_gaussian_actor_forward.1} parent=39 // pred_check
          %p239 = pneg %p34
        $region42: #{diagonal_gaussian_actor_forward.1} parent=39 // pred_check_branch
          %241 = sbr.rel (%p239) target = $region44
        $region43: #{diagonal_gaussian_actor_forward.1} parent=39 // pred_region
          %s242 = smul.u32 16, %s14
          %p243 = scmp.lt.s32.totalorder %s242, 31
          %s244 = scalar_select %p243, %s242, 31
          %s245 = smul.addr %s244, 8
          %s246 = scalar_lea.vmem %s0, %s245
          %s247 = smul.u32 16, %s14
        $region44: #{diagonal_gaussian_actor_forward.1} parent=39 // pred_fallthru
          _
      $region40: #{diagonal_gaussian_actor_forward.1} parent=5 // pred_fallthru
        _
      %p248 = scmp.le.s32.totalorder 1, %s14
      %p249 = scmp.lt.s32.totalorder %s14, 3
      %p250 = pnand %p248, %p249
      %p251 = pneg %p250
      // Predicated region
      $region45: #{diagonal_gaussian_actor_forward.1} parent=5 // pred_check
        _
      $region46: #{diagonal_gaussian_actor_forward.1} parent=5 // pred_check_branch
        %253 = sbr.rel (%p250) target = $region48
      $region47: #{diagonal_gaussian_actor_forward.1} parent=5 // pred_region
        %s254 = ssub.s32 %s14, 1
        // Predicated region
        $region49: #{diagonal_gaussian_actor_forward.1} parent=47 // pred_check
          %p255 = pneg %p145
        $region50: #{diagonal_gaussian_actor_forward.1} parent=47 // pred_check_branch
          %257 = sbr.rel (%p255) target = $region52
        $region51: #{diagonal_gaussian_actor_forward.1} parent=47 // pred_region
          %258 = dma.done [#allocation3], 2048
        $region52: #{diagonal_gaussian_actor_forward.1} parent=47 // pred_fallthru
          _
        %s259 = smul.u32 16, %s19
        %p260 = scmp.lt.s32.totalorder %s259, 31
        %s261 = scalar_select %p260, %s259, 31
        %s262 = smul.addr %s261, 8
        %s263 = scalar_lea.vmem %s0, %s262
        %p264 = pneg %p40
        %p265 = pneg %p37
        %p266 = pneg %p61
        %p267 = pneg %p58
        %p268 = pneg %p82
        %p269 = pneg %p79
        %p270 = pneg %p103
        %p271 = pneg %p100
        %p272 = pneg %p124
        %p273 = pneg %p121
        %p274 = pneg %p145
        %p275 = pneg %p142
        %p276 = pneg %p166
        %p277 = pneg %p163
        %p278 = pneg %p192
        %p279 = pneg %p189
        %s280 = smul.u32 16, %s19
        %p281 = scmp.lt.s32.totalorder %s280, 31
        %s282 = scalar_select %p281, %s280, 31
        %s283 = smul.addr %s282, 4
        %s284 = scalar_lea.vmem %s7, %s283
        %s285 = smul.u32 16, %s19
        %p286 = scmp.lt.s32.totalorder %s285, 31
        %s287 = scalar_select %p286, %s285, 31
        %s288 = smul.addr %s287, 8
        %s289 = scalar_lea.vmem %s0, %s288
        %s290 = smul.u32 16, %s19
        %s291 = smul.u32 16, %s19
        %p292 = scmp.lt.s32.totalorder %s291, 31
        %s293 = scalar_select %p292, %s291, 31
        %s294 = smul.addr %s293, 4
        %s295 = scalar_lea.vmem %s7, %s294
        %s296 = smul.u32 16, %s19
        %v298 = vld [vmem:[%s289] sm:$0xff]
        %v299 = vld [vmem:[%s289 + $0x8] sm:$0xff]
        %v300 = vld [vmem:[%s289 + $0x10] sm:$0xff]
        %v301 = vld [vmem:[%s289 + $0x18] sm:$0xff]
        %v302 = vld [vmem:[%s289 + $0x20] sm:$0xff]
        %v303 = vld [vmem:[%s289 + $0x28] sm:$0xff]
        %v304 = vld [vmem:[%s289 + $0x30] sm:$0xff]
        %v305 = vld [vmem:[%s289 + $0x38] sm:$0xff]
        %v306 = vld [vmem:[%s289 + $0x40] sm:$0xff]
        %v307 = vld [vmem:[%s289 + $0x48] sm:$0xff]
        %v308 = vld [vmem:[%s289 + $0x50] sm:$0xff]
        %v309 = vld [vmem:[%s289 + $0x58] sm:$0xff]
        %v310 = vld [vmem:[%s289 + $0x60] sm:$0xff]
        %v311 = vld [vmem:[%s289 + $0x68] sm:$0xff]
        %v312 = vld [vmem:[%s289 + $0x70] sm:$0xff]
        %v313 = vld [vmem:[%s289 + $0x78] sm:$0xff]
        %v314 = vpack.c.bf16 %v299, %v298
        %v315 = vpack.c.bf16 %v301, %v300
        %v316 = vpack.c.bf16 %v303, %v302
        %v317 = vpack.c.bf16 %v305, %v304
        %v318 = vpack.c.bf16 %v307, %v306
        %v319 = vpack.c.bf16 %v309, %v308
        %v320 = vpack.c.bf16 %v311, %v310
        %v321 = vpack.c.bf16 %v313, %v312
        %v322 = vld [vmem:[%s1] sm:$0xff]
        %v323 = vld [vmem:[%s1 + $0x8] sm:$0xff]
        %v324 = vld [vmem:[%s2] sm:$0x3]
        %v326 = vlaneseq
        %v327 = vshrl.u32 %v326, 7
        %v328 = vsub.s32 0, %v327
        %v329 = vrot.slane %v324, %v328
        %v330 = vlaneseq
        %v331 = vshrl.u32 %v330, 7
        %v332 = vsub.s32 1, %v331
        %v333 = vrot.slane %v324, %v332
        %v338 = vunpack.c.l.b16 %v322
        %v339 = vunpack.c.h.b16 %v322
        %v340 = vunpack.c.l.b16 %v323
        %v341 = vunpack.c.h.b16 %v323
        %v342 = vpack.c.b16 %v340, %v338
        %v343 = vpack.c.b16 %v341, %v339
        %vm346 = vcmask 130048
        %v348 = vsel %vm346, %v314, 0
        %v351 = vsel %vm346, %v315, 0
        %v354 = vsel %vm346, %v316, 0
        %v357 = vsel %vm346, %v317, 0
        %v360 = vsel %vm346, %v318, 0
        %v363 = vsel %vm346, %v319, 0
        %v366 = vsel %vm346, %v320, 0
        %v369 = vsel %vm346, %v321, 0
        %371 = vmatprep.subr.bf16.mxu0 %v343
        %372 = vmatpush1.bf16.msra.mxu0 %v342
        %373 = vmatprep.subr.bf16.mxu0 0
        %374 = vmatpush1.bf16.msra.mxu0 0
        %375 = vmatprep.subr.bf16.mxu0 0
        %376 = vmatpush1.bf16.msra.mxu0 0
        %377 = vmatprep.subr.bf16.mxu0 0
        %378 = vmatpush1.bf16.msra.mxu0 0
        %379 = vmatprep.subr.bf16.mxu0 0
        %380 = vmatpush1.bf16.msra.mxu0 0
        %381 = vmatprep.subr.bf16.mxu0 0
        %382 = vmatpush1.bf16.msra.mxu0 0
        %383 = vmatprep.subr.bf16.mxu0 0
        %384 = vmatpush1.bf16.msra.mxu0 0
        %385 = vmatprep.subr.bf16.mxu0 0
        %386 = vmatpush1.bf16.msra.mxu0 0
        %387 = vmatprep.subr.bf16.mxu0 0
        %388 = vmatpush1.bf16.msra.mxu0 0
        %389 = vmatprep.subr.bf16.mxu0 0
        %390 = vmatpush1.bf16.msra.mxu0 0
        %391 = vmatprep.subr.bf16.mxu0 0
        %392 = vmatpush1.bf16.msra.mxu0 0
        %393 = vmatprep.subr.bf16.mxu0 0
        %394 = vmatpush1.bf16.msra.mxu0 0
        %395 = vmatprep.subr.bf16.mxu0 0
        %396 = vmatpush1.bf16.msra.mxu0 0
        %397 = vmatprep.subr.bf16.mxu0 0
        %398 = vmatpush1.bf16.msra.mxu0 0
        %399 = vmatprep.subr.bf16.mxu0 0
        %400 = vmatpush1.bf16.msra.mxu0 0
        %401 = vmatprep.subr.bf16.mxu0 0
        %402 = vmatpush1.bf16.msra.mxu0 0
        %403 = vmatprep.mubr.bf16.mxu0 0
        %404 = vmatmul.mubr.bf16.gmra.mrb[0].mxu0 %v348
        %v405 = vpop.f32.mrb[0].mxu0
        %v406 = vadd.f32 %v329, %v405
        %v407 = vpop.f32.mrb[0].mxu0
        %v408 = vadd.f32 %v333, %v407
        %v409 = vpop.f32.mrb[0].mxu0
        %v410 = vadd.f32 %v329, %v409
        %v411 = vpop.f32.mrb[0].mxu0
        %v412 = vadd.f32 %v333, %v411
        %413 = vmatprep.mubr.bf16.mxu0 0
        %414 = vmatmul.mubr.bf16.gmra.mrb[0].mxu0 %v351
        %v415 = vpop.f32.mrb[0].mxu0
        %v416 = vadd.f32 %v329, %v415
        %v417 = vpop.f32.mrb[0].mxu0
        %v418 = vadd.f32 %v333, %v417
        %v419 = vpop.f32.mrb[0].mxu0
        %v420 = vadd.f32 %v329, %v419
        %v421 = vpop.f32.mrb[0].mxu0
        %v422 = vadd.f32 %v333, %v421
        %423 = vmatprep.mubr.bf16.mxu0 0
        %424 = vmatmul.mubr.bf16.gmra.mrb[0].mxu0 %v354
        %v425 = vpop.f32.mrb[0].mxu0
        %v426 = vadd.f32 %v329, %v425
        %v427 = vpop.f32.mrb[0].mxu0
        %v428 = vadd.f32 %v333, %v427
        %v429 = vpop.f32.mrb[0].mxu0
        %v430 = vadd.f32 %v329, %v429
        %v431 = vpop.f32.mrb[0].mxu0
        %v432 = vadd.f32 %v333, %v431
        %433 = vmatprep.mubr.bf16.mxu0 0
        %434 = vmatmul.mubr.bf16.gmra.mrb[0].mxu0 %v357
        %v435 = vpop.f32.mrb[0].mxu0
        %v436 = vadd.f32 %v329, %v435
        %v437 = vpop.f32.mrb[0].mxu0
        %v438 = vadd.f32 %v333, %v437
        %v439 = vpop.f32.mrb[0].mxu0
        %v440 = vadd.f32 %v329, %v439
        %v441 = vpop.f32.mrb[0].mxu0
        %v442 = vadd.f32 %v333, %v441
        %443 = vmatprep.mubr.bf16.mxu0 0
        %444 = vmatmul.mubr.bf16.gmra.mrb[0].mxu0 %v360
        %v445 = vpop.f32.mrb[0].mxu0
        %v446 = vadd.f32 %v329, %v445
        %v447 = vpop.f32.mrb[0].mxu0
        %v448 = vadd.f32 %v333, %v447
        %v449 = vpop.f32.mrb[0].mxu0
        %v450 = vadd.f32 %v329, %v449
        %v451 = vpop.f32.mrb[0].mxu0
        %v452 = vadd.f32 %v333, %v451
        %453 = vmatprep.mubr.bf16.mxu0 0
        %454 = vmatmul.mubr.bf16.gmra.mrb[0].mxu0 %v363
        %v455 = vpop.f32.mrb[0].mxu0
        %v456 = vadd.f32 %v329, %v455
        %v457 = vpop.f32.mrb[0].mxu0
        %v458 = vadd.f32 %v333, %v457
        %v459 = vpop.f32.mrb[0].mxu0
        %v460 = vadd.f32 %v329, %v459
        %v461 = vpop.f32.mrb[0].mxu0
        %v462 = vadd.f32 %v333, %v461
        %463 = vmatprep.mubr.bf16.mxu0 0
        %464 = vmatmul.mubr.bf16.gmra.mrb[0].mxu0 %v366
        %v465 = vpop.f32.mrb[0].mxu0
        %v466 = vadd.f32 %v329, %v465
        %v467 = vpop.f32.mrb[0].mxu0
        %v468 = vadd.f32 %v333, %v467
        %v469 = vpop.f32.mrb[0].mxu0
        %v470 = vadd.f32 %v329, %v469
        %v471 = vpop.f32.mrb[0].mxu0
        %v472 = vadd.f32 %v333, %v471
        %473 = vmatprep.mubr.bf16.mxu0 0
        %474 = vmatmul.mubr.bf16.gmra.mrb[0].mxu0 %v369
        %v475 = vpop.f32.mrb[0].mxu0
        %v476 = vadd.f32 %v329, %v475
        %v477 = vpop.f32.mrb[0].mxu0
        %v478 = vadd.f32 %v333, %v477
        %v479 = vpop.f32.mrb[0].mxu0
        %v480 = vadd.f32 %v329, %v479
        %v481 = vpop.f32.mrb[0].mxu0
        %v482 = vadd.f32 %v333, %v481
        %483 = vdwg.mxu0
        %v484 = vmax.f32 %v406, 0.0
        %v485 = vmax.f32 %v408, 0.0
        %v486 = vmax.f32 %v410, 0.0
        %v487 = vmax.f32 %v412, 0.0
        %v488 = vmax.f32 %v416, 0.0
        %v489 = vmax.f32 %v418, 0.0
        %v490 = vmax.f32 %v420, 0.0
        %v491 = vmax.f32 %v422, 0.0
        %v492 = vmax.f32 %v426, 0.0
        %v493 = vmax.f32 %v428, 0.0
        %v494 = vmax.f32 %v430, 0.0
        %v495 = vmax.f32 %v432, 0.0
        %v496 = vmax.f32 %v436, 0.0
        %v497 = vmax.f32 %v438, 0.0
        %v498 = vmax.f32 %v440, 0.0
        %v499 = vmax.f32 %v442, 0.0
        %v500 = vmax.f32 %v446, 0.0
        %v501 = vmax.f32 %v448, 0.0
        %v502 = vmax.f32 %v450, 0.0
        %v503 = vmax.f32 %v452, 0.0
        %v504 = vmax.f32 %v456, 0.0
        %v505 = vmax.f32 %v458, 0.0
        %v506 = vmax.f32 %v460, 0.0
        %v507 = vmax.f32 %v462, 0.0
        %v508 = vmax.f32 %v466, 0.0
        %v509 = vmax.f32 %v468, 0.0
        %v510 = vmax.f32 %v470, 0.0
        %v511 = vmax.f32 %v472, 0.0
        %v512 = vmax.f32 %v476, 0.0
        %v513 = vmax.f32 %v478, 0.0
        %v514 = vmax.f32 %v480, 0.0
        %v515 = vmax.f32 %v482, 0.0
        %v516 = vpack.c.bf16 %v486, %v484
        %v517 = vpack.c.bf16 %v487, %v485
        %v518 = vpack.c.bf16 %v490, %v488
        %v519 = vpack.c.bf16 %v491, %v489
        %v520 = vpack.c.bf16 %v494, %v492
        %v521 = vpack.c.bf16 %v495, %v493
        %v522 = vpack.c.bf16 %v498, %v496
        %v523 = vpack.c.bf16 %v499, %v497
        %v524 = vpack.c.bf16 %v502, %v500
        %v525 = vpack.c.bf16 %v503, %v501
        %v526 = vpack.c.bf16 %v506, %v504
        %v527 = vpack.c.bf16 %v507, %v505
        %v528 = vpack.c.bf16 %v510, %v508
        %v529 = vpack.c.bf16 %v511, %v509
        %v530 = vpack.c.bf16 %v514, %v512
        %v531 = vpack.c.bf16 %v515, %v513
        %v532 = vld [vmem:[%s3] sm:$0xff]
        %v533 = vld [vmem:[%s3 + $0x8] sm:$0xff]
        %v534 = vld [vmem:[%s3 + $0x10] sm:$0xff]
        %v535 = vld [vmem:[%s3 + $0x18] sm:$0xff]
        %v536 = vld [vmem:[%s3 + $0x20] sm:$0xff]
        %v537 = vld [vmem:[%s3 + $0x28] sm:$0xff]
        %v538 = vld [vmem:[%s3 + $0x30] sm:$0xff]
        %v539 = vld [vmem:[%s3 + $0x38] sm:$0xff]
        %v540 = vld [vmem:[%s3 + $0x40] sm:$0xff]
        %v541 = vld [vmem:[%s3 + $0x48] sm:$0xff]
        %v542 = vld [vmem:[%s3 + $0x50] sm:$0xff]
        %v543 = vld [vmem:[%s3 + $0x58] sm:$0xff]
        %v544 = vld [vmem:[%s3 + $0x60] sm:$0xff]
        %v545 = vld [vmem:[%s3 + $0x68] sm:$0xff]
        %v546 = vld [vmem:[%s3 + $0x70] sm:$0xff]
        %v547 = vld [vmem:[%s3 + $0x78] sm:$0xff]
        %v548 = vld [vmem:[%s3 + $0x80] sm:$0xff]
        %v549 = vld [vmem:[%s3 + $0x88] sm:$0xff]
        %v550 = vld [vmem:[%s3 + $0x90] sm:$0xff]
        %v551 = vld [vmem:[%s3 + $0x98] sm:$0xff]
        %v552 = vld [vmem:[%s3 + $0xa0] sm:$0xff]
        %v553 = vld [vmem:[%s3 + $0xa8] sm:$0xff]
        %v554 = vld [vmem:[%s3 + $0xb0] sm:$0xff]
        %v555 = vld [vmem:[%s3 + $0xb8] sm:$0xff]
        %v556 = vld [vmem:[%s3 + $0xc0] sm:$0xff]
        %v557 = vld [vmem:[%s3 + $0xc8] sm:$0xff]
        %v558 = vld [vmem:[%s3 + $0xd0] sm:$0xff]
        %v559 = vld [vmem:[%s3 + $0xd8] sm:$0xff]
        %v560 = vld [vmem:[%s3 + $0xe0] sm:$0xff]
        %v561 = vld [vmem:[%s3 + $0xe8] sm:$0xff]
        %v562 = vld [vmem:[%s3 + $0xf0] sm:$0xff]
        %v563 = vld [vmem:[%s3 + $0xf8] sm:$0xff]
        %v564 = vld [vmem:[%s4] sm:$0x3]
        %v566 = vlaneseq
        %v567 = vshrl.u32 %v566, 7
        %v568 = vsub.s32 0, %v567
        %v569 = vrot.slane %v564, %v568
        %v570 = vlaneseq
        %v571 = vshrl.u32 %v570, 7
        %v572 = vsub.s32 1, %v571
        %v573 = vrot.slane %v564, %v572
        %v608 = vunpack.c.l.b16 %v532
        %v609 = vunpack.c.h.b16 %v532
        %v610 = vunpack.c.l.b16 %v533
        %v611 = vunpack.c.h.b16 %v533
        %v612 = vunpack.c.l.b16 %v534
        %v613 = vunpack.c.h.b16 %v534
        %v614 = vunpack.c.l.b16 %v535
        %v615 = vunpack.c.h.b16 %v535
        %v616 = vunpack.c.l.b16 %v536
        %v617 = vunpack.c.h.b16 %v536
        %v618 = vunpack.c.l.b16 %v537
        %v619 = vunpack.c.h.b16 %v537
        %v620 = vunpack.c.l.b16 %v538
        %v621 = vunpack.c.h.b16 %v538
        %v622 = vunpack.c.l.b16 %v539
        %v623 = vunpack.c.h.b16 %v539
        %v624 = vunpack.c.l.b16 %v540
        %v625 = vunpack.c.h.b16 %v540
        %v626 = vunpack.c.l.b16 %v541
        %v627 = vunpack.c.h.b16 %v541
        %v628 = vunpack.c.l.b16 %v542
        %v629 = vunpack.c.h.b16 %v542
        %v630 = vunpack.c.l.b16 %v543
        %v631 = vunpack.c.h.b16 %v543
        %v632 = vunpack.c.l.b16 %v544
        %v633 = vunpack.c.h.b16 %v544
        %v634 = vunpack.c.l.b16 %v545
        %v635 = vunpack.c.h.b16 %v545
        %v636 = vunpack.c.l.b16 %v546
        %v637 = vunpack.c.h.b16 %v546
        %v638 = vunpack.c.l.b16 %v547
        %v639 = vunpack.c.h.b16 %v547
        %v640 = vunpack.c.l.b16 %v548
        %v641 = vunpack.c.h.b16 %v548
        %v642 = vunpack.c.l.b16 %v549
        %v643 = vunpack.c.h.b16 %v549
        %v644 = vunpack.c.l.b16 %v550
        %v645 = vunpack.c.h.b16 %v550
        %v646 = vunpack.c.l.b16 %v551
        %v647 = vunpack.c.h.b16 %v551
        %v648 = vunpack.c.l.b16 %v552
        %v649 = vunpack.c.h.b16 %v552
        %v650 = vunpack.c.l.b16 %v553
        %v651 = vunpack.c.h.b16 %v553
        %v652 = vunpack.c.l.b16 %v554
        %v653 = vunpack.c.h.b16 %v554
        %v654 = vunpack.c.l.b16 %v555
        %v655 = vunpack.c.h.b16 %v555
        %v656 = vunpack.c.l.b16 %v556
        %v657 = vunpack.c.h.b16 %v556
        %v658 = vunpack.c.l.b16 %v557
        %v659 = vunpack.c.h.b16 %v557
        %v660 = vunpack.c.l.b16 %v558
        %v661 = vunpack.c.h.b16 %v558
        %v662 = vunpack.c.l.b16 %v559
        %v663 = vunpack.c.h.b16 %v559
        %v664 = vunpack.c.l.b16 %v560
        %v665 = vunpack.c.h.b16 %v560
        %v666 = vunpack.c.l.b16 %v561
        %v667 = vunpack.c.h.b16 %v561
        %v668 = vunpack.c.l.b16 %v562
        %v669 = vunpack.c.h.b16 %v562
        %v670 = vunpack.c.l.b16 %v563
        %v671 = vunpack.c.h.b16 %v563
        %v672 = vpack.c.b16 %v610, %v608
        %v673 = vpack.c.b16 %v611, %v609
        %v674 = vpack.c.b16 %v614, %v612
        %v675 = vpack.c.b16 %v615, %v613
        %v676 = vpack.c.b16 %v618, %v616
        %v677 = vpack.c.b16 %v619, %v617
        %v678 = vpack.c.b16 %v622, %v620
        %v679 = vpack.c.b16 %v623, %v621
        %v680 = vpack.c.b16 %v626, %v624
        %v681 = vpack.c.b16 %v627, %v625
        %v682 = vpack.c.b16 %v630, %v628
        %v683 = vpack.c.b16 %v631, %v629
        %v684 = vpack.c.b16 %v634, %v632
        %v685 = vpack.c.b16 %v635, %v633
        %v686 = vpack.c.b16 %v638, %v636
        %v687 = vpack.c.b16 %v639, %v637
        %v688 = vpack.c.b16 %v642, %v640
        %v689 = vpack.c.b16 %v643, %v641
        %v690 = vpack.c.b16 %v646, %v644
        %v691 = vpack.c.b16 %v647, %v645
        %v692 = vpack.c.b16 %v650, %v648
        %v693 = vpack.c.b16 %v651, %v649
        %v694 = vpack.c.b16 %v654, %v652
        %v695 = vpack.c.b16 %v655, %v653
        %v696 = vpack.c.b16 %v658, %v656
        %v697 = vpack.c.b16 %v659, %v657
        %v698 = vpack.c.b16 %v662, %v660
        %v699 = vpack.c.b16 %v663, %v661
        %v700 = vpack.c.b16 %v666, %v664
        %v701 = vpack.c.b16 %v667, %v665
        %v702 = vpack.c.b16 %v670, %v668
        %v703 = vpack.c.b16 %v671, %v669
        %736 = vmatprep.subr.bf16.mxu0 %v673
        %737 = vmatpush1.bf16.msra.mxu0 %v672
        %738 = vmatprep.subr.bf16.mxu0 %v675
        %739 = vmatpush1.bf16.msra.mxu0 %v674
        %740 = vmatprep.subr.bf16.mxu0 %v677
        %741 = vmatpush1.bf16.msra.mxu0 %v676
        %742 = vmatprep.subr.bf16.mxu0 %v679
        %743 = vmatpush1.bf16.msra.mxu0 %v678
        %744 = vmatprep.subr.bf16.mxu0 %v681
        %745 = vmatpush1.bf16.msra.mxu0 %v680
        %746 = vmatprep.subr.bf16.mxu0 %v683
        %747 = vmatpush1.bf16.msra.mxu0 %v682
        %748 = vmatprep.subr.bf16.mxu0 %v685
        %749 = vmatpush1.bf16.msra.mxu0 %v684
        %750 = vmatprep.subr.bf16.mxu0 %v687
        %751 = vmatpush1.bf16.msra.mxu0 %v686
        %752 = vmatprep.subr.bf16.mxu0 %v689
        %753 = vmatpush1.bf16.msra.mxu0 %v688
        %754 = vmatprep.subr.bf16.mxu0 %v691
        %755 = vmatpush1.bf16.msra.mxu0 %v690
        %756 = vmatprep.subr.bf16.mxu0 %v693
        %757 = vmatpush1.bf16.msra.mxu0 %v692
        %758 = vmatprep.subr.bf16.mxu0 %v695
        %759 = vmatpush1.bf16.msra.mxu0 %v694
        %760 = vmatprep.subr.bf16.mxu0 %v697
        %761 = vmatpush1.bf16.msra.mxu0 %v696
        %762 = vmatprep.subr.bf16.mxu0 %v699
        %763 = vmatpush1.bf16.msra.mxu0 %v698
        %764 = vmatprep.subr.bf16.mxu0 %v701
        %765 = vmatpush1.bf16.msra.mxu0 %v700
        %766 = vmatprep.subr.bf16.mxu0 %v703
        %767 = vmatpush1.bf16.msra.mxu0 %v702
        %768 = vmatprep.mubr.bf16.mxu0 %v517
        %769 = vmatmul.mubr.bf16.gmra.mrb[0].mxu0 %v516
        %v770 = vpop.f32.mrb[0].mxu0
        %v771 = vadd.f32 %v569, %v770
        %v772 = vpop.f32.mrb[0].mxu0
        %v773 = vadd.f32 %v573, %v772
        %v774 = vpop.f32.mrb[0].mxu0
        %v775 = vadd.f32 %v569, %v774
        %v776 = vpop.f32.mrb[0].mxu0
        %v777 = vadd.f32 %v573, %v776
        %778 = vmatprep.mubr.bf16.mxu0 %v519
        %779 = vmatmul.mubr.bf16.gmra.mrb[0].mxu0 %v518
        %v780 = vpop.f32.mrb[0].mxu0
        %v781 = vadd.f32 %v569, %v780
        %v782 = vpop.f32.mrb[0].mxu0
        %v783 = vadd.f32 %v573, %v782
        %v784 = vpop.f32.mrb[0].mxu0
        %v785 = vadd.f32 %v569, %v784
        %v786 = vpop.f32.mrb[0].mxu0
        %v787 = vadd.f32 %v573, %v786
        %788 = vmatprep.mubr.bf16.mxu0 %v521
        %789 = vmatmul.mubr.bf16.gmra.mrb[0].mxu0 %v520
        %v790 = vpop.f32.mrb[0].mxu0
        %v791 = vadd.f32 %v569, %v790
        %v792 = vpop.f32.mrb[0].mxu0
        %v793 = vadd.f32 %v573, %v792
        %v794 = vpop.f32.mrb[0].mxu0
        %v795 = vadd.f32 %v569, %v794
        %v796 = vpop.f32.mrb[0].mxu0
        %v797 = vadd.f32 %v573, %v796
        %798 = vmatprep.mubr.bf16.mxu0 %v523
        %799 = vmatmul.mubr.bf16.gmra.mrb[0].mxu0 %v522
        %v800 = vpop.f32.mrb[0].mxu0
        %v801 = vadd.f32 %v569, %v800
        %v802 = vpop.f32.mrb[0].mxu0
        %v803 = vadd.f32 %v573, %v802
        %v804 = vpop.f32.mrb[0].mxu0
        %v805 = vadd.f32 %v569, %v804
        %v806 = vpop.f32.mrb[0].mxu0
        %v807 = vadd.f32 %v573, %v806
        %808 = vmatprep.mubr.bf16.mxu0 %v525
        %809 = vmatmul.mubr.bf16.gmra.mrb[0].mxu0 %v524
        %v810 = vpop.f32.mrb[0].mxu0
        %v811 = vadd.f32 %v569, %v810
        %v812 = vpop.f32.mrb[0].mxu0
        %v813 = vadd.f32 %v573, %v812
        %v814 = vpop.f32.mrb[0].mxu0
        %v815 = vadd.f32 %v569, %v814
        %v816 = vpop.f32.mrb[0].mxu0
        %v817 = vadd.f32 %v573, %v816
        %818 = vmatprep.mubr.bf16.mxu0 %v527
        %819 = vmatmul.mubr.bf16.gmra.mrb[0].mxu0 %v526
        %v820 = vpop.f32.mrb[0].mxu0
        %v821 = vadd.f32 %v569, %v820
        %v822 = vpop.f32.mrb[0].mxu0
        %v823 = vadd.f32 %v573, %v822
        %v824 = vpop.f32.mrb[0].mxu0
        %v825 = vadd.f32 %v569, %v824
        %v826 = vpop.f32.mrb[0].mxu0
        %v827 = vadd.f32 %v573, %v826
        %828 = vmatprep.mubr.bf16.mxu0 %v529
        %829 = vmatmul.mubr.bf16.gmra.mrb[0].mxu0 %v528
        %v830 = vpop.f32.mrb[0].mxu0
        %v831 = vadd.f32 %v569, %v830
        %v832 = vpop.f32.mrb[0].mxu0
        %v833 = vadd.f32 %v573, %v832
        %v834 = vpop.f32.mrb[0].mxu0
        %v835 = vadd.f32 %v569, %v834
        %v836 = vpop.f32.mrb[0].mxu0
        %v837 = vadd.f32 %v573, %v836
        %838 = vmatprep.mubr.bf16.mxu0 %v531
        %839 = vmatmul.mubr.bf16.gmra.mrb[0].mxu0 %v530
        %v840 = vpop.f32.mrb[0].mxu0
        %v841 = vadd.f32 %v569, %v840
        %v842 = vpop.f32.mrb[0].mxu0
        %v843 = vadd.f32 %v573, %v842
        %v844 = vpop.f32.mrb[0].mxu0
        %v845 = vadd.f32 %v569, %v844
        %v846 = vpop.f32.mrb[0].mxu0
        %v847 = vadd.f32 %v573, %v846
        %848 = vdwg.mxu0
        %v849 = vmax.f32 %v771, 0.0
        %v850 = vmax.f32 %v773, 0.0
        %v851 = vmax.f32 %v775, 0.0
        %v852 = vmax.f32 %v777, 0.0
        %v853 = vmax.f32 %v781, 0.0
        %v854 = vmax.f32 %v783, 0.0
        %v855 = vmax.f32 %v785, 0.0
        %v856 = vmax.f32 %v787, 0.0
        %v857 = vmax.f32 %v791, 0.0
        %v858 = vmax.f32 %v793, 0.0
        %v859 = vmax.f32 %v795, 0.0
        %v860 = vmax.f32 %v797, 0.0
        %v861 = vmax.f32 %v801, 0.0
        %v862 = vmax.f32 %v803, 0.0
        %v863 = vmax.f32 %v805, 0.0
        %v864 = vmax.f32 %v807, 0.0
        %v865 = vmax.f32 %v811, 0.0
        %v866 = vmax.f32 %v813, 0.0
        %v867 = vmax.f32 %v815, 0.0
        %v868 = vmax.f32 %v817, 0.0
        %v869 = vmax.f32 %v821, 0.0
        %v870 = vmax.f32 %v823, 0.0
        %v871 = vmax.f32 %v825, 0.0
        %v872 = vmax.f32 %v827, 0.0
        %v873 = vmax.f32 %v831, 0.0
        %v874 = vmax.f32 %v833, 0.0
        %v875 = vmax.f32 %v835, 0.0
        %v876 = vmax.f32 %v837, 0.0
        %v877 = vmax.f32 %v841, 0.0
        %v878 = vmax.f32 %v843, 0.0
        %v879 = vmax.f32 %v845, 0.0
        %v880 = vmax.f32 %v847, 0.0
        %v881 = vpack.c.bf16 %v851, %v849
        %v882 = vpack.c.bf16 %v852, %v850
        %v883 = vpack.c.bf16 %v855, %v853
        %v884 = vpack.c.bf16 %v856, %v854
        %v885 = vpack.c.bf16 %v859, %v857
        %v886 = vpack.c.bf16 %v860, %v858
        %v887 = vpack.c.bf16 %v863, %v861
        %v888 = vpack.c.bf16 %v864, %v862
        %v889 = vpack.c.bf16 %v867, %v865
        %v890 = vpack.c.bf16 %v868, %v866
        %v891 = vpack.c.bf16 %v871, %v869
        %v892 = vpack.c.bf16 %v872, %v870
        %v893 = vpack.c.bf16 %v875, %v873
        %v894 = vpack.c.bf16 %v876, %v874
        %v895 = vpack.c.bf16 %v879, %v877
        %v896 = vpack.c.bf16 %v880, %v878
        %v897 = vld [vmem:[#allocation2] sm:$0xf]
        %v898 = vld [vmem:[#allocation2 + $0x4] sm:$0xf]
        %v899 = vld [vmem:[#allocation2 + $0x8] sm:$0xf]
        %v900 = vld [vmem:[#allocation2 + $0xc] sm:$0xf]
        %v901 = vld [vmem:[#allocation2 + $0x10] sm:$0xf]
        %v902 = vld [vmem:[#allocation2 + $0x14] sm:$0xf]
        %v903 = vld [vmem:[#allocation2 + $0x18] sm:$0xf]
        %v904 = vld [vmem:[#allocation2 + $0x1c] sm:$0xf]
        %v905 = vld [vmem:[#allocation2 + $0x20] sm:$0xf]
        %v906 = vld [vmem:[#allocation2 + $0x24] sm:$0xf]
        %v907 = vld [vmem:[#allocation2 + $0x28] sm:$0xf]
        %v908 = vld [vmem:[#allocation2 + $0x2c] sm:$0xf]
        %v909 = vld [vmem:[#allocation2 + $0x30] sm:$0xf]
        %v910 = vld [vmem:[#allocation2 + $0x34] sm:$0xf]
        %v911 = vld [vmem:[#allocation2 + $0x38] sm:$0xf]
        %v912 = vld [vmem:[#allocation2 + $0x3c] sm:$0xf]
        %v913 = vld [vmem:[#allocation2 + $0x40] sm:$0xf]
        %v914 = vld [vmem:[#allocation2 + $0x44] sm:$0xf]
        %v915 = vld [vmem:[#allocation2 + $0x48] sm:$0xf]
        %v916 = vld [vmem:[#allocation2 + $0x4c] sm:$0xf]
        %v917 = vld [vmem:[#allocation2 + $0x50] sm:$0xf]
        %v918 = vld [vmem:[#allocation2 + $0x54] sm:$0xf]
        %v919 = vld [vmem:[#allocation2 + $0x58] sm:$0xf]
        %v920 = vld [vmem:[#allocation2 + $0x5c] sm:$0xf]
        %v921 = vld [vmem:[#allocation2 + $0x60] sm:$0xf]
        %v922 = vld [vmem:[#allocation2 + $0x64] sm:$0xf]
        %v923 = vld [vmem:[#allocation2 + $0x68] sm:$0xf]
        %v924 = vld [vmem:[#allocation2 + $0x6c] sm:$0xf]
        %v925 = vld [vmem:[#allocation2 + $0x70] sm:$0xf]
        %v926 = vld [vmem:[#allocation2 + $0x74] sm:$0xf]
        %v927 = vld [vmem:[#allocation2 + $0x78] sm:$0xf]
        %v928 = vld [vmem:[#allocation2 + $0x7c] sm:$0xf]
        %v929 = vld [vmem:[%s6] sm:$0x1]
        %v931 = vlaneseq
        %v932 = vshrl.u32 %v931, 7
        %v933 = vsub.s32 0, %v932
        %v934 = vrot.slane %v929, %v933
        %v968 = vunpack.c.l.b16 %v897
        %v969 = vunpack.c.l.b16 %v898
        %v970 = vunpack.c.l.b16 %v899
        %v971 = vunpack.c.l.b16 %v900
        %v972 = vunpack.c.l.b16 %v901
        %v973 = vunpack.c.l.b16 %v902
        %v974 = vunpack.c.l.b16 %v903
        %v975 = vunpack.c.l.b16 %v904
        %v976 = vunpack.c.l.b16 %v905
        %v977 = vunpack.c.l.b16 %v906
        %v978 = vunpack.c.l.b16 %v907
        %v979 = vunpack.c.l.b16 %v908
        %v980 = vunpack.c.l.b16 %v909
        %v981 = vunpack.c.l.b16 %v910
        %v982 = vunpack.c.l.b16 %v911
        %v983 = vunpack.c.l.b16 %v912
        %v984 = vunpack.c.l.b16 %v913
        %v985 = vunpack.c.l.b16 %v914
        %v986 = vunpack.c.l.b16 %v915
        %v987 = vunpack.c.l.b16 %v916
        %v988 = vunpack.c.l.b16 %v917
        %v989 = vunpack.c.l.b16 %v918
        %v990 = vunpack.c.l.b16 %v919
        %v991 = vunpack.c.l.b16 %v920
        %v992 = vunpack.c.l.b16 %v921
        %v993 = vunpack.c.l.b16 %v922
        %v994 = vunpack.c.l.b16 %v923
        %v995 = vunpack.c.l.b16 %v924
        %v996 = vunpack.c.l.b16 %v925
        %v997 = vunpack.c.l.b16 %v926
        %v998 = vunpack.c.l.b16 %v927
        %v999 = vunpack.c.l.b16 %v928
        %v1000 = vpack.c.b16 %v969, %v968
        %v1001 = vpack.c.b16 %v971, %v970
        %v1002 = vpack.c.b16 %v973, %v972
        %v1003 = vpack.c.b16 %v975, %v974
        %v1004 = vpack.c.b16 %v977, %v976
        %v1005 = vpack.c.b16 %v979, %v978
        %v1006 = vpack.c.b16 %v981, %v980
        %v1007 = vpack.c.b16 %v983, %v982
        %v1008 = vpack.c.b16 %v985, %v984
        %v1009 = vpack.c.b16 %v987, %v986
        %v1010 = vpack.c.b16 %v989, %v988
        %v1011 = vpack.c.b16 %v991, %v990
        %v1012 = vpack.c.b16 %v993, %v992
        %v1013 = vpack.c.b16 %v995, %v994
        %v1014 = vpack.c.b16 %v997, %v996
        %v1015 = vpack.c.b16 %v999, %v998
        %1032 = vmatprep.subr.bf16.mxu0 0
        %1033 = vmatpush1.bf16.msra.mxu0 %v1000
        %1034 = vmatprep.subr.bf16.mxu0 0
        %1035 = vmatpush1.bf16.msra.mxu0 %v1001
        %1036 = vmatprep.subr.bf16.mxu0 0
        %1037 = vmatpush1.bf16.msra.mxu0 %v1002
        %1038 = vmatprep.subr.bf16.mxu0 0
        %1039 = vmatpush1.bf16.msra.mxu0 %v1003
        %1040 = vmatprep.subr.bf16.mxu0 0
        %1041 = vmatpush1.bf16.msra.mxu0 %v1004
        %1042 = vmatprep.subr.bf16.mxu0 0
        %1043 = vmatpush1.bf16.msra.mxu0 %v1005
        %1044 = vmatprep.subr.bf16.mxu0 0
        %1045 = vmatpush1.bf16.msra.mxu0 %v1006
        %1046 = vmatprep.subr.bf16.mxu0 0
        %1047 = vmatpush1.bf16.msra.mxu0 %v1007
        %1048 = vmatprep.subr.bf16.mxu0 0
        %1049 = vmatpush1.bf16.msra.mxu0 %v1008
        %1050 = vmatprep.subr.bf16.mxu0 0
        %1051 = vmatpush1.bf16.msra.mxu0 %v1009
        %1052 = vmatprep.subr.bf16.mxu0 0
        %1053 = vmatpush1.bf16.msra.mxu0 %v1010
        %1054 = vmatprep.subr.bf16.mxu0 0
        %1055 = vmatpush1.bf16.msra.mxu0 %v1011
        %1056 = vmatprep.subr.bf16.mxu0 0
        %1057 = vmatpush1.bf16.msra.mxu0 %v1012
        %1058 = vmatprep.subr.bf16.mxu0 0
        %1059 = vmatpush1.bf16.msra.mxu0 %v1013
        %1060 = vmatprep.subr.bf16.mxu0 0
        %1061 = vmatpush1.bf16.msra.mxu0 %v1014
        %1062 = vmatprep.subr.bf16.mxu0 0
        %1063 = vmatpush1.bf16.msra.mxu0 %v1015
        %1064 = vmatprep.mubr.bf16.mxu0 %v882
        %1065 = vmatmul.mubr.bf16.gmra.mrb[0].mxu0 %v881
        %v1066 = vpop.f32.mrb[0].mxu0
        %v1067 = vadd.f32 %v934, %v1066
        %v1068 = vpop.f32.mrb[0].mxu0
        %v1069 = vpop.f32.mrb[0].mxu0
        %v1070 = vadd.f32 %v934, %v1069
        %v1071 = vpop.f32.mrb[0].mxu0
        %1072 = vmatprep.mubr.bf16.mxu0 %v884
        %1073 = vmatmul.mubr.bf16.gmra.mrb[0].mxu0 %v883
        %v1074 = vpop.f32.mrb[0].mxu0
        %v1075 = vadd.f32 %v934, %v1074
        %v1076 = vpop.f32.mrb[0].mxu0
        %v1077 = vpop.f32.mrb[0].mxu0
        %v1078 = vadd.f32 %v934, %v1077
        %v1079 = vpop.f32.mrb[0].mxu0
        %1080 = vmatprep.mubr.bf16.mxu0 %v886
        %1081 = vmatmul.mubr.bf16.gmra.mrb[0].mxu0 %v885
        %v1082 = vpop.f32.mrb[0].mxu0
        %v1083 = vadd.f32 %v934, %v1082
        %v1084 = vpop.f32.mrb[0].mxu0
        %v1085 = vpop.f32.mrb[0].mxu0
        %v1086 = vadd.f32 %v934, %v1085
        %v1087 = vpop.f32.mrb[0].mxu0
        %1088 = vmatprep.mubr.bf16.mxu0 %v888
        %1089 = vmatmul.mubr.bf16.gmra.mrb[0].mxu0 %v887
        %v1090 = vpop.f32.mrb[0].mxu0
        %v1091 = vadd.f32 %v934, %v1090
        %v1092 = vpop.f32.mrb[0].mxu0
        %v1093 = vpop.f32.mrb[0].mxu0
        %v1094 = vadd.f32 %v934, %v1093
        %v1095 = vpop.f32.mrb[0].mxu0
        %1096 = vmatprep.mubr.bf16.mxu0 %v890
        %1097 = vmatmul.mubr.bf16.gmra.mrb[0].mxu0 %v889
        %v1098 = vpop.f32.mrb[0].mxu0
        %v1099 = vadd.f32 %v934, %v1098
        %v1100 = vpop.f32.mrb[0].mxu0
        %v1101 = vpop.f32.mrb[0].mxu0
        %v1102 = vadd.f32 %v934, %v1101
        %v1103 = vpop.f32.mrb[0].mxu0
        %1104 = vmatprep.mubr.bf16.mxu0 %v892
        %1105 = vmatmul.mubr.bf16.gmra.mrb[0].mxu0 %v891
        %v1106 = vpop.f32.mrb[0].mxu0
        %v1107 = vadd.f32 %v934, %v1106
        %v1108 = vpop.f32.mrb[0].mxu0
        %v1109 = vpop.f32.mrb[0].mxu0
        %v1110 = vadd.f32 %v934, %v1109
        %v1111 = vpop.f32.mrb[0].mxu0
        %1112 = vmatprep.mubr.bf16.mxu0 %v894
        %1113 = vmatmul.mubr.bf16.gmra.mrb[0].mxu0 %v893
        %v1114 = vpop.f32.mrb[0].mxu0
        %v1115 = vadd.f32 %v934, %v1114
        %v1116 = vpop.f32.mrb[0].mxu0
        %v1117 = vpop.f32.mrb[0].mxu0
        %v1118 = vadd.f32 %v934, %v1117
        %v1119 = vpop.f32.mrb[0].mxu0
        %1120 = vmatprep.mubr.bf16.mxu0 %v896
        %1121 = vmatmul.mubr.bf16.gmra.mrb[0].mxu0 %v895
        %v1122 = vpop.f32.mrb[0].mxu0
        %v1123 = vadd.f32 %v934, %v1122
        %v1124 = vpop.f32.mrb[0].mxu0
        %v1125 = vpop.f32.mrb[0].mxu0
        %v1126 = vadd.f32 %v934, %v1125
        %v1127 = vpop.f32.mrb[0].mxu0
        %1128 = vdwg.mxu0
        %v1129 = vtanh.pop %v1067
        %v1130 = vtanh.pop %v1070
        %v1131 = vtanh.pop %v1075
        %v1132 = vtanh.pop %v1078
        %v1133 = vtanh.pop %v1083
        %v1134 = vtanh.pop %v1086
        %v1135 = vtanh.pop %v1091
        %v1136 = vtanh.pop %v1094
        %v1137 = vtanh.pop %v1099
        %v1138 = vtanh.pop %v1102
        %v1139 = vtanh.pop %v1107
        %v1140 = vtanh.pop %v1110
        %v1141 = vtanh.pop %v1115
        %v1142 = vtanh.pop %v1118
        %v1143 = vtanh.pop %v1123
        %v1144 = vtanh.pop %v1126
        %v1145 = vmul.f32 %v1129, 3.5
        %v1146 = vmul.f32 %v1130, 3.5
        %v1147 = vmul.f32 %v1131, 3.5
        %v1148 = vmul.f32 %v1132, 3.5
        %v1149 = vmul.f32 %v1133, 3.5
        %v1150 = vmul.f32 %v1134, 3.5
        %v1151 = vmul.f32 %v1135, 3.5
        %v1152 = vmul.f32 %v1136, 3.5
        %v1153 = vmul.f32 %v1137, 3.5
        %v1154 = vmul.f32 %v1138, 3.5
        %v1155 = vmul.f32 %v1139, 3.5
        %v1156 = vmul.f32 %v1140, 3.5
        %v1157 = vmul.f32 %v1141, 3.5
        %v1158 = vmul.f32 %v1142, 3.5
        %v1159 = vmul.f32 %v1143, 3.5
        %v1160 = vmul.f32 %v1144, 3.5
        %v1161 = vadd.f32 %v1145, -1.5
        %v1162 = vadd.f32 %v1146, -1.5
        %v1163 = vadd.f32 %v1147, -1.5
        %v1164 = vadd.f32 %v1148, -1.5
        %v1165 = vadd.f32 %v1149, -1.5
        %v1166 = vadd.f32 %v1150, -1.5
        %v1167 = vadd.f32 %v1151, -1.5
        %v1168 = vadd.f32 %v1152, -1.5
        %v1169 = vadd.f32 %v1153, -1.5
        %v1170 = vadd.f32 %v1154, -1.5
        %v1171 = vadd.f32 %v1155, -1.5
        %v1172 = vadd.f32 %v1156, -1.5
        %v1173 = vadd.f32 %v1157, -1.5
        %v1174 = vadd.f32 %v1158, -1.5
        %v1175 = vadd.f32 %v1159, -1.5
        %v1176 = vadd.f32 %v1160, -1.5
        %v1177 = vmul.f32 %v1161, 1.442695
        %v1178 = vpow.pop %v1177
        %v1179 = vmul.f32 %v1162, 1.442695
        %v1180 = vpow.pop %v1179
        %v1181 = vmul.f32 %v1163, 1.442695
        %v1182 = vpow.pop %v1181
        %v1183 = vmul.f32 %v1164, 1.442695
        %v1184 = vpow.pop %v1183
        %v1185 = vmul.f32 %v1165, 1.442695
        %v1186 = vpow.pop %v1185
        %v1187 = vmul.f32 %v1166, 1.442695
        %v1188 = vpow.pop %v1187
        %v1189 = vmul.f32 %v1167, 1.442695
        %v1190 = vpow.pop %v1189
        %v1191 = vmul.f32 %v1168, 1.442695
        %v1192 = vpow.pop %v1191
        %v1193 = vmul.f32 %v1169, 1.442695
        %v1194 = vpow.pop %v1193
        %v1195 = vmul.f32 %v1170, 1.442695
        %v1196 = vpow.pop %v1195
        %v1197 = vmul.f32 %v1171, 1.442695
        %v1198 = vpow.pop %v1197
        %v1199 = vmul.f32 %v1172, 1.442695
        %v1200 = vpow.pop %v1199
        %v1201 = vmul.f32 %v1173, 1.442695
        %v1202 = vpow.pop %v1201
        %v1203 = vmul.f32 %v1174, 1.442695
        %v1204 = vpow.pop %v1203
        %v1205 = vmul.f32 %v1175, 1.442695
        %v1206 = vpow.pop %v1205
        %v1207 = vmul.f32 %v1176, 1.442695
        %v1208 = vpow.pop %v1207
        %1209 = vrot.lane.b32.xlu0 %v1129, 8
        %v1210 = vpop.permute.xlu0 %1209
        %1211 = vrot.lane.b32.xlu0 %v1130, 8
        %v1212 = vpop.permute.xlu0 %1211
        %1213 = vrot.lane.b32.xlu0 %v1131, 8
        %v1214 = vpop.permute.xlu0 %1213
        %1215 = vrot.lane.b32.xlu0 %v1132, 8
        %v1216 = vpop.permute.xlu0 %1215
        %1217 = vrot.lane.b32.xlu0 %v1133, 8
        %v1218 = vpop.permute.xlu0 %1217
        %1219 = vrot.lane.b32.xlu0 %v1134, 8
        %v1220 = vpop.permute.xlu0 %1219
        %1221 = vrot.lane.b32.xlu0 %v1135, 8
        %v1222 = vpop.permute.xlu0 %1221
        %1223 = vrot.lane.b32.xlu0 %v1136, 8
        %v1224 = vpop.permute.xlu0 %1223
        %1225 = vrot.lane.b32.xlu0 %v1137, 8
        %v1226 = vpop.permute.xlu0 %1225
        %1227 = vrot.lane.b32.xlu0 %v1138, 8
        %v1228 = vpop.permute.xlu0 %1227
        %1229 = vrot.lane.b32.xlu0 %v1139, 8
        %v1230 = vpop.permute.xlu0 %1229
        %1231 = vrot.lane.b32.xlu0 %v1140, 8
        %v1232 = vpop.permute.xlu0 %1231
        %1233 = vrot.lane.b32.xlu0 %v1141, 8
        %v1234 = vpop.permute.xlu0 %1233
        %1235 = vrot.lane.b32.xlu0 %v1142, 8
        %v1236 = vpop.permute.xlu0 %1235
        %1237 = vrot.lane.b32.xlu0 %v1143, 8
        %v1238 = vpop.permute.xlu0 %1237
        %1239 = vrot.lane.b32.xlu0 %v1144, 8
        %v1240 = vpop.permute.xlu0 %1239
        %v1241 = vlaneseq
        %v1242 = vand.u32 %v1241, 127
        %vm1243 = vcmp.lt.s32.totalorder %v1242, 4
        %vm1244 = vcmp.lt.s32.totalorder %v1242, 8
        %v1245 = vsel %vm1244, %v1178, %v1210
        %v1246 = vsel %vm1244, %v1180, %v1212
        %v1247 = vsel %vm1244, %v1182, %v1214
        %v1248 = vsel %vm1244, %v1184, %v1216
        %v1249 = vsel %vm1244, %v1186, %v1218
        %v1250 = vsel %vm1244, %v1188, %v1220
        %v1251 = vsel %vm1244, %v1190, %v1222
        %v1252 = vsel %vm1244, %v1192, %v1224
        %v1253 = vsel %vm1244, %v1194, %v1226
        %v1254 = vsel %vm1244, %v1196, %v1228
        %v1255 = vsel %vm1244, %v1198, %v1230
        %v1256 = vsel %vm1244, %v1200, %v1232
        %v1257 = vsel %vm1244, %v1202, %v1234
        %v1258 = vsel %vm1244, %v1204, %v1236
        %v1259 = vsel %vm1244, %v1206, %v1238
        %v1260 = vsel %vm1244, %v1208, %v1240
        %v1261 = vsel %vm1243, %v1067, %v1245
        %v1262 = vsel %vm1243, %v1070, %v1246
        %v1263 = vsel %vm1243, %v1075, %v1247
        %v1264 = vsel %vm1243, %v1078, %v1248
        %v1265 = vsel %vm1243, %v1083, %v1249
        %v1266 = vsel %vm1243, %v1086, %v1250
        %v1267 = vsel %vm1243, %v1091, %v1251
        %v1268 = vsel %vm1243, %v1094, %v1252
        %v1269 = vsel %vm1243, %v1099, %v1253
        %v1270 = vsel %vm1243, %v1102, %v1254
        %v1271 = vsel %vm1243, %v1107, %v1255
        %v1272 = vsel %vm1243, %v1110, %v1256
        %v1273 = vsel %vm1243, %v1115, %v1257
        %v1274 = vsel %vm1243, %v1118, %v1258
        %v1275 = vsel %vm1243, %v1123, %v1259
        %v1276 = vsel %vm1243, %v1126, %v1260
        %v1277 = vpack.c.bf16 %v1262, %v1261
        %v1278 = vpack.c.bf16 %v1264, %v1263
        %v1279 = vpack.c.bf16 %v1266, %v1265
        %v1280 = vpack.c.bf16 %v1268, %v1267
        %v1281 = vpack.c.bf16 %v1270, %v1269
        %v1282 = vpack.c.bf16 %v1272, %v1271
        %v1283 = vpack.c.bf16 %v1274, %v1273
        %v1284 = vpack.c.bf16 %v1276, %v1275
        %v1293 = vunpack.c.l.b16 %v1277
        %v1294 = vunpack.c.h.b16 %v1277
        %v1295 = vunpack.c.l.b16 %v1278
        %v1296 = vunpack.c.h.b16 %v1278
        %v1297 = vunpack.c.l.b16 %v1279
        %v1298 = vunpack.c.h.b16 %v1279
        %v1299 = vunpack.c.l.b16 %v1280
        %v1300 = vunpack.c.h.b16 %v1280
        %v1301 = vunpack.c.l.b16 %v1281
        %v1302 = vunpack.c.h.b16 %v1281
        %v1303 = vunpack.c.l.b16 %v1282
        %v1304 = vunpack.c.h.b16 %v1282
        %v1305 = vunpack.c.l.b16 %v1283
        %v1306 = vunpack.c.h.b16 %v1283
        %v1307 = vunpack.c.l.b16 %v1284
        %v1308 = vunpack.c.h.b16 %v1284
        %v1309 = vpack.c.b16 %v1293, %v1293
        %v1310 = vpack.c.b16 %v1294, %v1294
        %v1311 = vpack.c.b16 %v1295, %v1295
        %v1312 = vpack.c.b16 %v1296, %v1296
        %v1313 = vpack.c.b16 %v1297, %v1297
        %v1314 = vpack.c.b16 %v1298, %v1298
        %v1315 = vpack.c.b16 %v1299, %v1299
        %v1316 = vpack.c.b16 %v1300, %v1300
        %v1317 = vpack.c.b16 %v1301, %v1301
        %v1318 = vpack.c.b16 %v1302, %v1302
        %v1319 = vpack.c.b16 %v1303, %v1303
        %v1320 = vpack.c.b16 %v1304, %v1304
        %v1321 = vpack.c.b16 %v1305, %v1305
        %v1322 = vpack.c.b16 %v1306, %v1306
        %v1323 = vpack.c.b16 %v1307, %v1307
        %v1324 = vpack.c.b16 %v1308, %v1308
        %1341 = vst [vmem:[%s295] sm:$0xf] %v1309
        %1342 = vst [vmem:[%s295 + $0x4] sm:$0xf] %v1310
        %1343 = vst [vmem:[%s295 + $0x8] sm:$0xf] %v1311
        %1344 = vst [vmem:[%s295 + $0xc] sm:$0xf] %v1312
        %1345 = vst [vmem:[%s295 + $0x10] sm:$0xf] %v1313
        %1346 = vst [vmem:[%s295 + $0x14] sm:$0xf] %v1314
        %1347 = vst [vmem:[%s295 + $0x18] sm:$0xf] %v1315
        %1348 = vst [vmem:[%s295 + $0x1c] sm:$0xf] %v1316
        %1349 = vst [vmem:[%s295 + $0x20] sm:$0xf] %v1317
        %1350 = vst [vmem:[%s295 + $0x24] sm:$0xf] %v1318
        %1351 = vst [vmem:[%s295 + $0x28] sm:$0xf] %v1319
        %1352 = vst [vmem:[%s295 + $0x2c] sm:$0xf] %v1320
        %1353 = vst [vmem:[%s295 + $0x30] sm:$0xf] %v1321
        %1354 = vst [vmem:[%s295 + $0x34] sm:$0xf] %v1322
        %1355 = vst [vmem:[%s295 + $0x38] sm:$0xf] %v1323
        %1356 = vst [vmem:[%s295 + $0x3c] sm:$0xf] %v1324
        %s1357 = smul.u32 16, %s19
        %p1358 = scmp.lt.s32.totalorder %s1357, 31
        %s1359 = scalar_select %p1358, %s1357, 31
        %s1360 = smul.addr %s1359, 4
        %s1361 = scalar_lea.vmem %s7, %s1360
        // Predicated region
        $region53: #{diagonal_gaussian_actor_forward.1} parent=47 // pred_check
          %p1362 = pneg %p189
        $region54: #{diagonal_gaussian_actor_forward.1} parent=47 // pred_check_branch
          %1364 = sbr.rel (%p1362) target = $region56
        $region55: #{diagonal_gaussian_actor_forward.1} parent=47 // pred_region
          %s1365 = smul.u32 16, %s19
        $region56: #{diagonal_gaussian_actor_forward.1} parent=47 // pred_fallthru
          _
      $region48: #{diagonal_gaussian_actor_forward.1} parent=5 // pred_fallthru
        _
      %p1366 = scmp.le.s32.totalorder 2, %s14
      // Predicated region
      $region57: #{diagonal_gaussian_actor_forward.1} parent=5 // pred_check
        %p1367 = pneg %p1366
      $region58: #{diagonal_gaussian_actor_forward.1} parent=5 // pred_check_branch
        %1369 = sbr.rel (%p1367) target = $region60
      $region59: #{diagonal_gaussian_actor_forward.1} parent=5 // pred_region
        %s1370 = ssub.s32 %s14, 2
        // Predicated region
        $region61: #{diagonal_gaussian_actor_forward.1} parent=59 // pred_check
          %p1371 = pneg %p195
        $region62: #{diagonal_gaussian_actor_forward.1} parent=59 // pred_check_branch
          %1373 = sbr.rel (%p1371) target = $region64
        $region63: #{diagonal_gaussian_actor_forward.1} parent=59 // pred_region
          %s1374 = smul.u32 16, %s20
          %p1375 = scmp.lt.s32.totalorder %s1374, 31
          %s1376 = scalar_select %p1375, %s1374, 31
          %s1377 = smul.addr %s1376, 4
          %s1378 = scalar_lea.vmem %s7, %s1377
        $region64: #{diagonal_gaussian_actor_forward.1} parent=59 // pred_fallthru
          _
      $region60: #{diagonal_gaussian_actor_forward.1} parent=5 // pred_fallthru
        _
    $region6: #{diagonal_gaussian_actor_forward.1} parent=1 // loop_footer
      %s18 = sadd.s32 1, %s14
    $region7: #{diagonal_gaussian_actor_forward.1} parent=1 // loop_footer_branch
      %13 = sbr.rel target = $region3
    $region8: #{diagonal_gaussian_actor_forward.1} parent=1 // loop_exit
      _
    %1379 = vsyncpa [#allocation3], 1
    %s1380 = scalar_lea.sflag [#allocation3], 1
    %1381 = vsyncpa %s1380, 1

</llo_original>
